<compile_context>
chip_gen: v7x
topology: tpu7x:2x2x1
jax: 0.10.0
libtpu: 0.0.40
codegen_flags: <defaults>
</compile_context>

<pallas_src>
import functools

import jax
import jax.numpy as jnp
from jax import lax
from jax.experimental import pallas as pl
from jax.experimental.pallas import tpu as pltpu

_MiB = 1024 * 1024


# ----------------------------- activations (ACT2FN subset used by CLIP) -----------

def _quick_gelu(x):
    return x * jax.nn.sigmoid(1.702 * x)


_ACTIVATIONS = {
    "quick_gelu": _quick_gelu,                                    # CLIP default
    "gelu": lambda x: jax.nn.gelu(x, approximate=False),
    "gelu_new": lambda x: jax.nn.gelu(x, approximate=True),
    "gelu_pytorch_tanh": lambda x: jax.nn.gelu(x, approximate=True),
}


# ----------------------------- feature / hardware probes ---------------------------

def _pipeline_mode_supported():
    """Narrow, construction-time probe for BlockSpec(pipeline_mode=pl.Buffered(n))."""
    if not hasattr(pl, "Buffered"):
        return False
    try:
        pl.BlockSpec((8, 128), lambda i: (0, 0), pipeline_mode=pl.Buffered(1))
        return True
    except TypeError:
        return False


_HAS_PIPELINE_MODE = _pipeline_mode_supported()


def _spec(shape, index_map, buffers=None):
    """BlockSpec with optional explicit buffer depth (silently ignored on old builds)."""
    if buffers is not None and _HAS_PIPELINE_MODE:
        return pl.BlockSpec(shape, index_map, pipeline_mode=pl.Buffered(buffers))
    return pl.BlockSpec(shape, index_map)


def _physical_vmem_bytes():
    try:
        info = pltpu.get_tpu_info()
        cap = getattr(info, "vmem_capacity_bytes", None)
        if cap:
            return int(cap)
    except Exception:
        pass
    return 64 * _MiB            # conservative default: assume v7x-sized VMEM


def _vmem_limit_bytes():
    phys = _physical_vmem_bytes()
    if phys >= 96 * _MiB:       # v5e / v6e: 128 MiB physical per TensorCore
        return 100 * _MiB
    return 48 * _MiB            # v7x: 64 MiB physical -> leave compiler headroom


# ----------------------------- tiling helpers --------------------------------------

def _pick_token_tile(T, tm_req):
    """Token tile: big (default 512), multiple of 8, with >=2 (even) tiles when the
    input is large enough so the parallel axis shards over both v7x TensorCores."""
    if T <= 256:
        return T                                   # one full-extent tile
    tm_req = max(8, (tm_req // 8) * 8)
    n_tiles = max(2, pl.cdiv(T, tm_req))
    if n_tiles % 2:
        n_tiles += 1                               # even tile count -> balanced cores
    tm = ((pl.cdiv(T, n_tiles) + 7) // 8) * 8
    return max(8, min(tm, T))


def _pick_i_chunk(I, requested):
    """Intermediate chunk: the largest multiple of 128 <= requested that divides I,
    else full I (never an unaligned partial chunk -> keeps lane layout clean)."""
    if requested is None:
        requested = 1024
    requested = min(requested, I)
    t = (requested // 128) * 128
    while t >= 128:
        if I % t == 0:
            return t
        t -= 128
    return I


# ----------------------------- kernels ----------------------------------------------

def _mlp_resident_kernel(x_ref, w1_ref, b1_ref, w2_ref, b2_ref, o_ref, *,
                         act_fn, compute_dtype, icb):
    """Weights fully VMEM-resident (single grid axis over token tiles).

    x_ref : (tm, H)   token tile (input dtype; cast on-chip)
    w1_ref: (H, I)    fc1 weight (compute dtype)
    b1_ref: (1, I)    fc1 bias (f32)
    w2_ref: (I, H)    fc2 weight (compute dtype)
    b2_ref: (1, H)    fc2 bias (f32)
    o_ref : (tm, H)   output tile
    """
    x = x_ref[...].astype(compute_dtype)
    tm = x_ref.shape[0]
    H = w2_ref.shape[1]
    I = w1_ref.shape[1]
    n_chunks = I // icb

    def chunk(jo):
        h = jnp.dot(x, w1_ref[:, pl.ds(jo, icb)],
                    preferred_element_type=jnp.float32)
        h = act_fn(h + b1_ref[:, pl.ds(jo, icb)])
        return jnp.dot(h.astype(compute_dtype), w2_ref[pl.ds(jo, icb), :],
                       preferred_element_type=jnp.float32)

    if n_chunks <= 1:
        acc = chunk(0)                              # no accumulator / scratch at all
    else:
        # Bound the live (tm, icb) f32 intermediate without re-streaming weights.
        def body(j, acc):
            jo = pl.multiple_of(j * icb, icb)
            return acc + chunk(jo)

        acc = lax.fori_loop(0, n_chunks, body,
                            jnp.zeros((tm, H), jnp.float32), unroll=True)

    o_ref[...] = (acc + b2_ref[...]).astype(o_ref.dtype)


def _mlp_chunked_kernel(x_ref, w1_ref, b1_ref, w2_ref, b2_ref, o_ref, acc_ref, *,
                        act_fn, compute_dtype):
    """Fallback: intermediate dim chunked on a second ("arbitrary") grid axis with a
    (tm, H) f32 VMEM accumulator."""
    k = pl.program_id(1)

    @pl.when(k == 0)
    def _init():
        # Start the accumulator at the fc2 bias (saves the extra add at finalize).
        acc_ref[...] = jnp.broadcast_to(b2_ref[...], acc_ref.shape)

    x = x_ref[...].astype(compute_dtype)
    h = jnp.dot(x, w1_ref[...], preferred_element_type=jnp.float32)
    h = act_fn(h + b1_ref[...])
    acc_ref[...] += jnp.dot(h.astype(compute_dtype), w2_ref[...],
                            preferred_element_type=jnp.float32)

    @pl.when(k == pl.num_programs(1) - 1)
    def _finalize():
        o_ref[...] = acc_ref[...].astype(o_ref.dtype)


# ----------------------------- jitted implementation --------------------------------

@functools.partial(jax.jit, static_argnames=("tm", "tik", "activation"))
def _clip_mlp_impl(hidden_states, w1, b1, w2, b2, *, tm, tik, activation):
    """hidden_states: [..., H]; w1: [H, I] (compute dtype); b1: [1, I] f32;
    w2: [I, H] (compute dtype); b2: [1, H] f32."""
    H = hidden_states.shape[-1]
    I = w1.shape[1]
    lead = hidden_states.shape[:-1]
    T = 1
    for d in lead:
        T *= d
    out_dtype = hidden_states.dtype
    compute_dtype = w1.dtype
    act_fn = _ACTIVATIONS[activation]

    x2d = hidden_states.reshape(T, H)       # NOT cast here: tile is cast on-chip

    x_itemsize = jnp.dtype(hidden_states.dtype).itemsize
    w_itemsize = jnp.dtype(compute_dtype).itemsize
    out_itemsize = jnp.dtype(out_dtype).itemsize

    vmem_limit = _vmem_limit_bytes()
    budget = int(0.75 * vmem_limit)

    tm_sel = _pick_token_tile(T, tm)
    weight_bytes = 2 * H * I * w_itemsize
    bias_bytes = (I + H) * 4
    w_mult = 1 if _HAS_PIPELINE_MODE else 2           # Buffered(1) halves residency cost
    icb = _pick_i_chunk(I, 1024)

    def resident_cost(tm_):
        return (2 * tm_ * H * (x_itemsize + out_itemsize)
                + w_mult * (weight_bytes + bias_bytes)
                + tm_ * H * 4 + tm_ * icb * 4)

    def chunked_cost(tm_, tik_):
        return (2 * tm_ * H * (x_itemsize + out_itemsize)
                + 2 * (2 * H * tik_ * w_itemsize + tik_ * 4) + H * 4
                + tm_ * H * 4 + tm_ * tik_ * 4)

    use_resident = resident_cost(tm_sel) <= budget
    n_i_tiles = pl.cdiv(T, tm_sel)

    if use_resident:
        weight_stream = weight_bytes + bias_bytes                 # fetched once
    else:
        tik_sel = _pick_i_chunk(I, tik)
        while tm_sel > 256 and chunked_cost(tm_sel, tik_sel) > budget:
            tm_sel = max(256, ((tm_sel // 2) // 8) * 8)
        n_i_tiles = pl.cdiv(T, tm_sel)
        nk = I // tik_sel
        weight_stream = n_i_tiles * (weight_bytes + I * 4) + H * 4  # re-streamed per tile

    cost = pl.CostEstimate(
        flops=4 * T * H * I,                    # two matmuls: 2*T*H*I MAC-FLOPs each
        transcendentals=T * I,                  # sigmoid/exp in the activation
        bytes_accessed=T * H * (x_itemsize + out_itemsize) + weight_stream,
    )
    compiler_params = pltpu.CompilerParams(
        dimension_semantics=("parallel",) if use_resident else ("parallel", "arbitrary"),
        vmem_limit_bytes=vmem_limit,
    )

    if use_resident:
        out2d = pl.pallas_call(
            functools.partial(_mlp_resident_kernel, act_fn=act_fn,
                              compute_dtype=compute_dtype, icb=icb),
            out_shape=jax.ShapeDtypeStruct((T, H), out_dtype),
            grid_spec=pltpu.PrefetchScalarGridSpec(
                num_scalar_prefetch=0,
                grid=(n_i_tiles,),
                in_specs=[
                    pl.BlockSpec((tm_sel, H), lambda i: (i, 0)),      # x tile
                    _spec((H, I), lambda i: (0, 0), buffers=1),       # fc1 weight (resident)
                    _spec((1, I), lambda i: (0, 0), buffers=1),       # fc1 bias
                    _spec((I, H), lambda i: (0, 0), buffers=1),       # fc2 weight (resident)
                    _spec((1, H), lambda i: (0, 0), buffers=1),       # fc2 bias
                ],
                out_specs=pl.BlockSpec((tm_sel, H), lambda i: (i, 0)),
            ),
            compiler_params=compiler_params,
            cost_estimate=cost,
        )(x2d, w1, b1, w2, b2)
    else:
        # Deep-buffer the moving weight slices only on 128-MiB parts (v5e/v6e).
        deep = 3 if (vmem_limit >= 96 * _MiB and nk > 1) else None
        out2d = pl.pallas_call(
            functools.partial(_mlp_chunked_kernel, act_fn=act_fn,
                              compute_dtype=compute_dtype),
            out_shape=jax.ShapeDtypeStruct((T, H), out_dtype),
            grid_spec=pltpu.PrefetchScalarGridSpec(
                num_scalar_prefetch=0,
                grid=(n_i_tiles, nk),
                in_specs=[
                    pl.BlockSpec((tm_sel, H), lambda i, k: (i, 0)),          # x tile
                    _spec((H, tik_sel), lambda i, k: (0, k), buffers=deep),  # fc1 wt slice
                    _spec((1, tik_sel), lambda i, k: (0, k), buffers=deep),  # fc1 bias slice
                    _spec((tik_sel, H), lambda i, k: (k, 0), buffers=deep),  # fc2 wt slice
                    _spec((1, H), lambda i, k: (0, 0), buffers=1),           # fc2 bias
                ],
                out_specs=pl.BlockSpec((tm_sel, H), lambda i, k: (i, 0)),
                scratch_shapes=[pltpu.VMEM((tm_sel, H), jnp.float32)],       # f32 accumulator
            ),
            compiler_params=compiler_params,
            cost_estimate=cost,
        )(x2d, w1, b1, w2, b2)

    return out2d.reshape(*lead, H)


# ----------------------------- public wrappers --------------------------------------

def prepare_clip_mlp_params(w1, b1, w2, b2, compute_dtype=jnp.bfloat16):
    """Cast / lay out parameters ONCE (outside the per-call path).

    w1: [H, I], w2: [I, H] -- (in, out) layout, i.e. torch nn.Linear weight transposed.
    Biases are kept in f32 (added to the f32 MXU accumulations).
    """
    cdt = jnp.dtype(compute_dtype)
    I = w1.shape[1]
    H = w2.shape[1]
    return dict(
        w1=jnp.asarray(w1, cdt),
        b1=jnp.asarray(b1, jnp.float32).reshape(1, I),
        w2=jnp.asarray(w2, cdt),
        b2=jnp.asarray(b2, jnp.float32).reshape(1, H),
    )


def make_clip_mlp(w1, b1, w2, b2, *, compute_dtype=jnp.bfloat16,
                  activation="quick_gelu", tm=512, tik=None):
    """Bind CLIPMLP parameters (pre-cast once) and return forward(hidden_states)."""
    params = prepare_clip_mlp_params(w1, b1, w2, b2, compute_dtype)

    def forward(hidden_states):
        return _clip_mlp_impl(hidden_states, params["w1"], params["b1"],
                              params["w2"], params["b2"],
                              tm=tm, tik=tik, activation=activation)

    return forward


def clip_mlp(hidden_states, w1, b1, w2, b2, *, compute_dtype=jnp.bfloat16,
             activation="quick_gelu", tm=512, tik=None):
    """One-off convenience wrapper (prefer make_clip_mlp for repeated calls)."""
    return make_clip_mlp(w1, b1, w2, b2, compute_dtype=compute_dtype,
                         activation=activation, tm=tm, tik=tik)(hidden_states)


# ----------------------------- reference & demo --------------------------------------

def reference_clip_mlp(hidden_states, w1, b1, w2, b2):
    h = jnp.einsum("bsh,hi->bsi", hidden_states, w1) + b1
    h = h * jax.nn.sigmoid(1.702 * h)
    return jnp.einsum("bsi,ih->bsh", h, w2) + b2


if __name__ == "__main__":
    # Small config consistent with CLIPMLP: hidden_size=32, intermediate_size=128.
    batch, seq, hidden, intermediate = 2, 8, 32, 128

    key = jax.random.PRNGKey(0)
    kx, kw1, kb1, kw2, kb2 = jax.random.split(key, 5)

    x = jax.random.normal(kx, (batch, seq, hidden), dtype=jnp.float32)
    # nn.Linear stores weight as (out, in); we pass the (in, out) layout directly.
    w1 = jax.random.normal(kw1, (hidden, intermediate), dtype=jnp.float32) * 0.02
    b1 = jax.random.normal(kb1, (intermediate,), dtype=jnp.float32) * 0.02
    w2 = jax.random.normal(kw2, (intermediate, hidden), dtype=jnp.float32) * 0.02
    b2 = jax.random.normal(kb2, (hidden,), dtype=jnp.float32) * 0.02

    ref = reference_clip_mlp(x, w1, b1, w2, b2)

    # Exact f32 path: must match the reference tightly.
    mlp_f32 = make_clip_mlp(w1, b1, w2, b2, compute_dtype=jnp.float32)
    out_f32 = jax.block_until_ready(mlp_f32(x))
    assert out_f32.shape == (batch, seq, hidden)
    assert jnp.allclose(out_f32, ref, atol=1e-5, rtol=1e-5), "f32 path mismatch vs reference"

    # Default mixed-precision path (bf16 MXU inputs, f32 accumulation): loose tolerance.
    mlp_bf16 = make_clip_mlp(w1, b1, w2, b2)          # weights cast to bf16 exactly once
    out_bf16 = jax.block_until_ready(mlp_bf16(x))
    assert out_bf16.shape == (batch, seq, hidden)
    assert jnp.allclose(out_bf16, ref, atol=2e-2, rtol=2e-2), "bf16 path mismatch vs reference"

    print("KERNEL_OK")
</pallas_src>

<mosaic_0001>
module attributes {stable_mosaic.version = 11 : i64} {
  func.func @_mlp_resident_kernel(%arg0: i32, %arg1: memref<16x32xf32, #tpu.memory_space<vmem>>, %arg2: memref<32x128xf32, #tpu.memory_space<vmem>>, %arg3: memref<1x128xf32, #tpu.memory_space<vmem>>, %arg4: memref<128x32xf32, #tpu.memory_space<vmem>>, %arg5: memref<1x32xf32, #tpu.memory_space<vmem>>, %arg6: memref<16x32xf32, #tpu.memory_space<vmem>>) attributes {dimension_semantics = [#tpu.dimension_semantics<parallel>], iteration_bounds = array<i64: 1>, scalar_prefetch = 0 : i64, scratch_operands = 0 : i64, tpu.core_type = #tpu.core_type<tc>, window_params = [{transform_indices = @transform_0, window_bounds = array<i64: 16, 32>}, {pipeline_mode = #tpu.pipeline_mode<synchronous>, transform_indices = @transform_1, window_bounds = array<i64: 32, 128>}, {pipeline_mode = #tpu.pipeline_mode<synchronous>, transform_indices = @transform_2, window_bounds = array<i64: 1, 128>}, {pipeline_mode = #tpu.pipeline_mode<synchronous>, transform_indices = @transform_3, window_bounds = array<i64: 128, 32>}, {pipeline_mode = #tpu.pipeline_mode<synchronous>, transform_indices = @transform_4, window_bounds = array<i64: 1, 32>}, {transform_indices = @transform_5, window_bounds = array<i64: 16, 32>}]} {
    %c0 = arith.constant 0 : index
    %c0_0 = arith.constant 0 : index
    %0 = vector.load %arg1[%c0, %c0_0] : memref<16x32xf32, #tpu.memory_space<vmem>>, vector<16x32xf32>
    %c0_1 = arith.constant 0 : index
    %c0_2 = arith.constant 0 : index
    %1 = vector.load %arg2[%c0_1, %c0_2] : memref<32x128xf32, #tpu.memory_space<vmem>>, vector<32x128xf32>
    %cst = arith.constant dense<0.000000e+00> : vector<16x128xf32>
    %2 = tpu.matmul %0, %1, %cst {dimension_numbers = #tpu.dot_dimension_numbers<[1], [0], [0], [1], [0, 0, 1, 1], [], []>} : vector<16x32xf32>, vector<32x128xf32>, vector<16x128xf32> -> vector<16x128xf32>
    %c0_3 = arith.constant 0 : index
    %c0_4 = arith.constant 0 : index
    %3 = vector.load %arg3[%c0_3, %c0_4] : memref<1x128xf32, #tpu.memory_space<vmem>>, vector<1x128xf32>
    %4 = vector.broadcast %3 : vector<1x128xf32> to vector<16x128xf32>
    %5 = arith.addf %2, %4 : vector<16x128xf32>
    %cst_5 = arith.constant 1.702000e+00 : f32
    %6 = vector.broadcast %cst_5 : f32 to vector<16x128xf32>
    %7 = arith.mulf %6, %5 : vector<16x128xf32>
    %8 = arith.negf %7 : vector<16x128xf32>
    %9 = math.exp %8 : vector<16x128xf32>
    %cst_6 = arith.constant 1.000000e+00 : f32
    %10 = vector.broadcast %cst_6 : f32 to vector<16x128xf32>
    %11 = arith.addf %10, %9 : vector<16x128xf32>
    %12 = arith.divf %10, %11 : vector<16x128xf32>
    %13 = arith.mulf %5, %12 : vector<16x128xf32>
    %c0_7 = arith.constant 0 : index
    %c0_8 = arith.constant 0 : index
    %14 = vector.load %arg4[%c0_7, %c0_8] : memref<128x32xf32, #tpu.memory_space<vmem>>, vector<128x32xf32>
    %cst_9 = arith.constant dense<0.000000e+00> : vector<16x32xf32>
    %15 = tpu.matmul %13, %14, %cst_9 {dimension_numbers = #tpu.dot_dimension_numbers<[1], [0], [0], [1], [0, 0, 1, 1], [], []>} : vector<16x128xf32>, vector<128x32xf32>, vector<16x32xf32> -> vector<16x32xf32>
    %c0_10 = arith.constant 0 : index
    %c0_11 = arith.constant 0 : index
    %16 = vector.load %arg5[%c0_10, %c0_11] : memref<1x32xf32, #tpu.memory_space<vmem>>, vector<1x32xf32>
    %17 = vector.broadcast %16 : vector<1x32xf32> to vector<16x32xf32>
    %18 = arith.addf %15, %17 : vector<16x32xf32>
    %c0_12 = arith.constant 0 : index
    %c0_13 = arith.constant 0 : index
    %19 = vector.load %arg6[%c0_12, %c0_13] : memref<16x32xf32, #tpu.memory_space<vmem>>, vector<16x32xf32>
    tpu.vector_store %arg6[%c0_12, %c0_13], %18 {strides = array<i32>} : memref<16x32xf32, #tpu.memory_space<vmem>>, vector<16x32xf32>,
    return
  }
  func.func @transform_0(%arg0: i32) -> (i32, i32) {
    %c0_i32 = arith.constant 0 : i32
    %c0_i32_0 = arith.constant 0 : i32
    return %arg0, %c0_i32 : i32, i32
  }
  func.func @transform_1(%arg0: i32) -> (i32, i32) {
    %c0_i32 = arith.constant 0 : i32
    %c0_i32_0 = arith.constant 0 : i32
    %c0_i32_1 = arith.constant 0 : i32
    return %c0_i32, %c0_i32_0 : i32, i32
  }
  func.func @transform_2(%arg0: i32) -> (i32, i32) {
    %c0_i32 = arith.constant 0 : i32
    %c0_i32_0 = arith.constant 0 : i32
    %c0_i32_1 = arith.constant 0 : i32
    return %c0_i32, %c0_i32_0 : i32, i32
  }
  func.func @transform_3(%arg0: i32) -> (i32, i32) {
    %c0_i32 = arith.constant 0 : i32
    %c0_i32_0 = arith.constant 0 : i32
    %c0_i32_1 = arith.constant 0 : i32
    return %c0_i32, %c0_i32_0 : i32, i32
  }
  func.func @transform_4(%arg0: i32) -> (i32, i32) {
    %c0_i32 = arith.constant 0 : i32
    %c0_i32_0 = arith.constant 0 : i32
    %c0_i32_1 = arith.constant 0 : i32
    return %c0_i32, %c0_i32_0 : i32, i32
  }
  func.func @transform_5(%arg0: i32) -> (i32, i32) {
    %c0_i32 = arith.constant 0 : i32
    %c0_i32_0 = arith.constant 0 : i32
    return %arg0, %c0_i32 : i32, i32
  }
}

</mosaic_0001>

<llo_original>
// kernel: _clip_mlp_impl.1
$region0: #{_clip_mlp_impl.1}
  #allocation0 [shape = 'u32[]', space=smem, size = 0x4, offset = 0x4, fixed_abs, tag = 'smem constant byte address 0x4 - core index']
  #allocation1 [shape = 'u32[144,128]{1,0:T(1,128)}', space=vmem, size = 0x12000, scoped, tag = 'internal scratch']
  %s0 = inlined_call_operand.vmem [shape: f32[16,32], index: 0, kind: input, shape index: {}]
  %s1 = inlined_call_operand.vmem [shape: f32[32,128], index: 1, kind: input, shape index: {}]
  %s2 = inlined_call_operand.vmem [shape: f32[1,128], index: 2, kind: input, shape index: {}]
  %s3 = inlined_call_operand.vmem [shape: f32[128,32], index: 3, kind: input, shape index: {}]
  %s4 = inlined_call_operand.vmem [shape: f32[1,32], index: 4, kind: input, shape index: {}]
  %s5 = inlined_call_operand.hbm [shape: f32[16,32], index: 5, kind: output, shape index: {}]
  %s6 = sld [smem:[#allocation0]]
  $region30: #{_clip_mlp_impl.1} parent=0
    _
  %s8 = ssub.s32 1, %s6
  %s9 = scalar_select 0, %s8, %s6
  $region1: #{_clip_mlp_impl.1} parent=0
    #allocation2 [shape = 'u8[8192]{0}', space=vmem, size = 0x2000, scoped, tag = 'output window, operand 0, single buffered']
    #allocation3 [shape = 's32[1]{0}', space=sflag, size = 0x4, scoped, tag = 'scoped memory for _clip_mlp_impl.1']
    %10 = vsyncpa [#allocation3], 0
    // Predicated region
    $region2: #{_clip_mlp_impl.1} parent=1 // pred_check
      _
    $region3: #{_clip_mlp_impl.1} parent=1 // pred_check_branch
      %12 = sbr.rel (0) target = $region5
    $region4: #{_clip_mlp_impl.1} parent=1 // pred_region
      _
    $region5: #{_clip_mlp_impl.1} parent=1 // pred_fallthru
      _
    // Predicated region
    $region6: #{_clip_mlp_impl.1} parent=1 // pred_check
      _
    $region7: #{_clip_mlp_impl.1} parent=1 // pred_check_branch
      %14 = sbr.rel (0) target = $region9
    $region8: #{_clip_mlp_impl.1} parent=1 // pred_region
      _
    $region9: #{_clip_mlp_impl.1} parent=1 // pred_fallthru
      _
    // Predicated region
    $region10: #{_clip_mlp_impl.1} parent=1 // pred_check
      _
    $region11: #{_clip_mlp_impl.1} parent=1 // pred_check_branch
      %16 = sbr.rel (0) target = $region13
    $region12: #{_clip_mlp_impl.1} parent=1 // pred_region
      _
    $region13: #{_clip_mlp_impl.1} parent=1 // pred_fallthru
      _
    // Predicated region
    $region14: #{_clip_mlp_impl.1} parent=1 // pred_check
      _
    $region15: #{_clip_mlp_impl.1} parent=1 // pred_check_branch
      %18 = sbr.rel (0) target = $region17
    $region16: #{_clip_mlp_impl.1} parent=1 // pred_region
      _
    $region17: #{_clip_mlp_impl.1} parent=1 // pred_fallthru
      _
    // Predicated region
    $region18: #{_clip_mlp_impl.1} parent=1 // pred_check
      _
    $region19: #{_clip_mlp_impl.1} parent=1 // pred_check_branch
      %20 = sbr.rel (0) target = $region21
    $region20: #{_clip_mlp_impl.1} parent=1 // pred_region
      _
    $region21: #{_clip_mlp_impl.1} parent=1 // pred_fallthru
      _
    %v21 = vld [vmem:[%s0] sm:$0xff]
    %v22 = vld [vmem:[%s0 + $0x8] sm:$0xff]
    %v23 = vld [vmem:[%s1] sm:$0xff]
    %v24 = vld [vmem:[%s1 + $0x8] sm:$0xff]
    %v25 = vld [vmem:[%s1 + $0x10] sm:$0xff]
    %v26 = vld [vmem:[%s1 + $0x18] sm:$0xff]
    %v27 = vld [vmem:[%s2] sm:$0x1]
    %v29 = vlaneseq
    %v30 = vshrl.u32 %v29, 7
    %v31 = vsub.s32 0, %v30
    %v32 = vrot.slane %v27, %v31
    %vm34 = vcmask 261120
    %v36 = vsel %vm34, %v21, 0
    %v39 = vsel %vm34, %v22, 0
    %41 = vmatprep.subr.mxu0 0.0
    %42 = vmatpush1.msra.mxu0 %v23
    %43 = vmatprep.subr.mxu0 0.0
    %44 = vmatpush1.msra.mxu0 %v24
    %45 = vmatprep.subr.mxu0 0.0
    %46 = vmatpush1.msra.mxu0 %v25
    %47 = vmatprep.subr.mxu0 0.0
    %48 = vmatpush1.msra.mxu0 %v26
    %49 = vmatprep.subr.mxu0 0.0
    %50 = vmatpush1.msra.mxu0 0.0
    %51 = vmatprep.subr.mxu0 0.0
    %52 = vmatpush1.msra.mxu0 0.0
    %53 = vmatprep.subr.mxu0 0.0
    %54 = vmatpush1.msra.mxu0 0.0
    %55 = vmatprep.subr.mxu0 0.0
    %56 = vmatpush1.msra.mxu0 0.0
    %57 = vmatprep.subr.mxu0 0.0
    %58 = vmatpush1.msra.mxu0 0.0
    %59 = vmatprep.subr.mxu0 0.0
    %60 = vmatpush1.msra.mxu0 0.0
    %61 = vmatprep.subr.mxu0 0.0
    %62 = vmatpush1.msra.mxu0 0.0
    %63 = vmatprep.subr.mxu0 0.0
    %64 = vmatpush1.msra.mxu0 0.0
    %65 = vmatprep.subr.mxu0 0.0
    %66 = vmatpush1.msra.mxu0 0.0
    %67 = vmatprep.subr.mxu0 0.0
    %68 = vmatpush1.msra.mxu0 0.0
    %69 = vmatprep.subr.mxu0 0.0
    %70 = vmatpush1.msra.mxu0 0.0
    %71 = vmatprep.subr.mxu0 0.0
    %72 = vmatpush1.msra.mxu0 0.0
    %73 = vmatprep.subr.mxu0 0.0
    %74 = vmatpush1.msra.mxu0 0.0
    %75 = vmatprep.subr.mxu0 0.0
    %76 = vmatpush1.msra.mxu0 0.0
    %77 = vmatprep.subr.mxu0 0.0
    %78 = vmatpush1.msra.mxu0 0.0
    %79 = vmatprep.subr.mxu0 0.0
    %80 = vmatpush1.msra.mxu0 0.0
    %81 = vmatprep.subr.mxu0 0.0
    %82 = vmatpush1.msra.mxu0 0.0
    %83 = vmatprep.subr.mxu0 0.0
    %84 = vmatpush1.msra.mxu0 0.0
    %85 = vmatprep.subr.mxu0 0.0
    %86 = vmatpush1.msra.mxu0 0.0
    %87 = vmatprep.subr.mxu0 0.0
    %88 = vmatpush1.msra.mxu0 0.0
    %89 = vmatprep.subr.mxu0 0.0
    %90 = vmatpush1.msra.mxu0 0.0
    %91 = vmatprep.subr.mxu0 0.0
    %92 = vmatpush1.msra.mxu0 0.0
    %93 = vmatprep.subr.mxu0 0.0
    %94 = vmatpush1.msra.mxu0 0.0
    %95 = vmatprep.subr.mxu0 0.0
    %96 = vmatpush1.msra.mxu0 0.0
    %97 = vmatprep.subr.mxu0 0.0
    %98 = vmatpush1.msra.mxu0 0.0
    %99 = vmatprep.subr.mxu0 0.0
    %100 = vmatpush1.msra.mxu0 0.0
    %101 = vmatprep.subr.mxu0 0.0
    %102 = vmatpush1.msra.mxu0 0.0
    %103 = vmatprep.subr.mxu0 0.0
    %104 = vmatpush1.msra.mxu0 0.0
    %105 = vmatprep.mubr.f32.mxu0 0.0
    %106 = vmatmul.mubr.f32.gmra.mrb[0].mxu0 %v36
    %v107 = vpop.f32.mrb[0].mxu0
    %v108 = vadd.f32 %v32, %v107
    %v109 = vpop.f32.mrb[0].mxu0
    %110 = vmatprep.mubr.f32.mxu0 0.0
    %111 = vmatmul.mubr.f32.gmra.mrb[0].mxu0 %v39
    %v112 = vpop.f32.mrb[0].mxu0
    %v113 = vadd.f32 %v32, %v112
    %v114 = vpop.f32.mrb[0].mxu0
    %115 = vdwg.mxu0
    %v116 = vmul.f32 %v108, 1.702
    %v117 = vmul.f32 %v113, 1.702
    %v118 = vxor.u32 %v116, 2147483648
    %v119 = vxor.u32 %v117, 2147483648
    %v120 = vmul.f32 %v118, 1.442695
    %v121 = vpow.pop %v120
    %v122 = vmul.f32 %v119, 1.442695
    %v123 = vpow.pop %v122
    %v124 = vadd.f32 %v121, 1.0
    %v125 = vadd.f32 %v123, 1.0
    %v126 = vrcp.pop %v124
    %v127 = vmul.f32 1.0, %v126
    %v128 = vrcp.pop %v125
    %v129 = vmul.f32 1.0, %v128
    %v130 = vmul.f32 %v108, %v127
    %v131 = vmul.f32 %v113, %v129
    %v132 = vld [vmem:[%s3] sm:$0xff]
    %v133 = vld [vmem:[%s3 + $0x8] sm:$0xff]
    %v134 = vld [vmem:[%s3 + $0x10] sm:$0xff]
    %v135 = vld [vmem:[%s3 + $0x18] sm:$0xff]
    %v136 = vld [vmem:[%s3 + $0x20] sm:$0xff]
    %v137 = vld [vmem:[%s3 + $0x28] sm:$0xff]
    %v138 = vld [vmem:[%s3 + $0x30] sm:$0xff]
    %v139 = vld [vmem:[%s3 + $0x38] sm:$0xff]
    %v140 = vld [vmem:[%s3 + $0x40] sm:$0xff]
    %v141 = vld [vmem:[%s3 + $0x48] sm:$0xff]
    %v142 = vld [vmem:[%s3 + $0x50] sm:$0xff]
    %v143 = vld [vmem:[%s3 + $0x58] sm:$0xff]
    %v144 = vld [vmem:[%s3 + $0x60] sm:$0xff]
    %v145 = vld [vmem:[%s3 + $0x68] sm:$0xff]
    %v146 = vld [vmem:[%s3 + $0x70] sm:$0xff]
    %v147 = vld [vmem:[%s3 + $0x78] sm:$0xff]
    %v148 = vld [vmem:[%s4] sm:$0x1]
    %v150 = vlaneseq
    %v151 = vshrl.u32 %v150, 7
    %v152 = vsub.s32 0, %v151
    %v153 = vrot.slane %v148, %v152
    %155 = vmatprep.subr.mxu0 0.0
    %156 = vmatpush1.msra.mxu0 %v132
    %157 = vmatprep.subr.mxu0 0.0
    %158 = vmatpush1.msra.mxu0 %v133
    %159 = vmatprep.subr.mxu0 0.0
    %160 = vmatpush1.msra.mxu0 %v134
    %161 = vmatprep.subr.mxu0 0.0
    %162 = vmatpush1.msra.mxu0 %v135
    %163 = vmatprep.subr.mxu0 0.0
    %164 = vmatpush1.msra.mxu0 %v136
    %165 = vmatprep.subr.mxu0 0.0
    %166 = vmatpush1.msra.mxu0 %v137
    %167 = vmatprep.subr.mxu0 0.0
    %168 = vmatpush1.msra.mxu0 %v138
    %169 = vmatprep.subr.mxu0 0.0
    %170 = vmatpush1.msra.mxu0 %v139
    %171 = vmatprep.subr.mxu0 0.0
    %172 = vmatpush1.msra.mxu0 %v140
    %173 = vmatprep.subr.mxu0 0.0
    %174 = vmatpush1.msra.mxu0 %v141
    %175 = vmatprep.subr.mxu0 0.0
    %176 = vmatpush1.msra.mxu0 %v142
    %177 = vmatprep.subr.mxu0 0.0
    %178 = vmatpush1.msra.mxu0 %v143
    %179 = vmatprep.subr.mxu0 0.0
    %180 = vmatpush1.msra.mxu0 %v144
    %181 = vmatprep.subr.mxu0 0.0
    %182 = vmatpush1.msra.mxu0 %v145
    %183 = vmatprep.subr.mxu0 0.0
    %184 = vmatpush1.msra.mxu0 %v146
    %185 = vmatprep.subr.mxu0 0.0
    %186 = vmatpush1.msra.mxu0 %v147
    %187 = vmatprep.subr.mxu0 0.0
    %188 = vmatpush1.msra.mxu0 0.0
    %189 = vmatprep.subr.mxu0 0.0
    %190 = vmatpush1.msra.mxu0 0.0
    %191 = vmatprep.subr.mxu0 0.0
    %192 = vmatpush1.msra.mxu0 0.0
    %193 = vmatprep.subr.mxu0 0.0
    %194 = vmatpush1.msra.mxu0 0.0
    %195 = vmatprep.subr.mxu0 0.0
    %196 = vmatpush1.msra.mxu0 0.0
    %197 = vmatprep.subr.mxu0 0.0
    %198 = vmatpush1.msra.mxu0 0.0
    %199 = vmatprep.subr.mxu0 0.0
    %200 = vmatpush1.msra.mxu0 0.0
    %201 = vmatprep.subr.mxu0 0.0
    %202 = vmatpush1.msra.mxu0 0.0
    %203 = vmatprep.subr.mxu0 0.0
    %204 = vmatpush1.msra.mxu0 0.0
    %205 = vmatprep.subr.mxu0 0.0
    %206 = vmatpush1.msra.mxu0 0.0
    %207 = vmatprep.subr.mxu0 0.0
    %208 = vmatpush1.msra.mxu0 0.0
    %209 = vmatprep.subr.mxu0 0.0
    %210 = vmatpush1.msra.mxu0 0.0
    %211 = vmatprep.subr.mxu0 0.0
    %212 = vmatpush1.msra.mxu0 0.0
    %213 = vmatprep.subr.mxu0 0.0
    %214 = vmatpush1.msra.mxu0 0.0
    %215 = vmatprep.subr.mxu0 0.0
    %216 = vmatpush1.msra.mxu0 0.0
    %217 = vmatprep.subr.mxu0 0.0
    %218 = vmatpush1.msra.mxu0 0.0
    %219 = vmatprep.mubr.f32.mxu0 0.0
    %220 = vmatmul.mubr.f32.gmra.mrb[0].mxu0 %v130
    %v221 = vpop.f32.mrb[0].mxu0
    %v222 = vadd.f32 %v153, %v221
    %v223 = vpop.f32.mrb[0].mxu0
    %224 = vmatprep.mubr.f32.mxu0 0.0
    %225 = vmatmul.mubr.f32.gmra.mrb[0].mxu0 %v131
    %v226 = vpop.f32.mrb[0].mxu0
    %v227 = vadd.f32 %v153, %v226
    %v228 = vpop.f32.mrb[0].mxu0
    %229 = vdwg.mxu0
    %230 = vst.msk [vmem:[#allocation2] sm:$0xff] %vm34, %v222
    %231 = vst.msk [vmem:[#allocation2 + $0x8] sm:$0xff] %vm34, %v227
    // Predicated region
    $region22: #{_clip_mlp_impl.1} parent=1 // pred_check
      _
    $region23: #{_clip_mlp_impl.1} parent=1 // pred_check_branch
      %233 = sbr.rel (0) target = $region25
    $region24: #{_clip_mlp_impl.1} parent=1 // pred_region
      %s235 = ssub.s32 256, 256
      %236 = vsyncadd [#allocation3], %s235
      %s237 = sshll.u32 [#allocation2], 4
      %s238 = int_to_ptr.vmem [resolvable:$true] %s237
      %243 = dma.vmem_to_hbm [thread:$0]  %s238, 256, %s5, [#allocation3], 128, 128, 8
    $region25: #{_clip_mlp_impl.1} parent=1 // pred_fallthru
      _
    // Predicated region
    $region26: #{_clip_mlp_impl.1} parent=1 // pred_check
      _
    $region27: #{_clip_mlp_impl.1} parent=1 // pred_check_branch
      %245 = sbr.rel (0) target = $region29
    $region28: #{_clip_mlp_impl.1} parent=1 // pred_region
      %246 = dma.done [#allocation3], 256
    $region29: #{_clip_mlp_impl.1} parent=1 // pred_fallthru
      _
    %247 = vsyncpa [#allocation3], 1

</llo_original>
